<compile_context>
chip_gen: v7x
topology: tpu7x:2x2x1
jax: 0.10.0
libtpu: 0.0.40
codegen_flags: <defaults>
</compile_context>

<pallas_src>
import jax
import jax.numpy as jnp
from jax.experimental import pallas as pl
from jax.experimental.pallas import tpu as pltpu


# ---------------------------------------------------------------------------
# helpers
# ---------------------------------------------------------------------------
def _round_up(x, m):
    return (x + m - 1) // m * m


def _sublane_multiple(dtype):
    # packed sublane multiple per element size (f32:8, bf16:16, int8/fp8:32)
    return {4: 8, 2: 16, 1: 32}.get(jnp.dtype(dtype).itemsize, 8)


def _pick_tile(dim, preferred, align=128):
    """Largest multiple of `align` that divides `dim` and is <= preferred.

    Falls back to the full dim (block_shape == array dim is always legal)."""
    if dim % align != 0 or dim <= align:
        return dim
    best = align
    t = align
    cap = min(preferred, dim)
    while t <= cap:
        if dim % t == 0:
            best = t
        t += align
    return best


def _tpu_vmem_bytes():
    """Physical VMEM capacity (conservative 64 MiB default if unknown)."""
    try:
        info = pltpu.get_tpu_info()
        for attr in ("vmem_capacity_bytes", "vmem_bytes", "vmem_size_bytes"):
            v = getattr(info, attr, None)
            if v:
                return int(v)
    except Exception:
        pass
    return 64 << 20


def _make_plan(H, I):
    """Pick tile sizes + VMEM cap once, at weight-load time."""
    vmem = _tpu_vmem_bytes()
    big_vmem = vmem >= (96 << 20)          # v5e / v6e: 128 MiB; v7x: 64 MiB
    # Leave headroom for Mosaic internal scratch; cap below physical VMEM.
    vmem_cap = max(min(vmem - (16 << 20), 100 << 20), 28 << 20)

    row_pref = 1024 if big_vmem else 512
    n_pref = 1024 if big_vmem else 512
    k_pref = 1024

    def estimate(tm, tn1, tk1, tn2, tk2):
        # worst-case (f32) double-buffered blocks + f32 accumulators
        s1 = 2 * (tm * tk1 + tk1 * 2 * tn1 + tm * tn1) * 4 + tm * 2 * tn1 * 4
        s2 = 2 * (tm * tk2 + tk2 * tn2 + tm * tn2) * 4 + tm * tn2 * 4
        return max(s1, s2)

    row, npref, kpref = row_pref, n_pref, k_pref
    while True:
        tn1 = _pick_tile(I, npref)
        tk1 = _pick_tile(H, kpref)
        tn2 = _pick_tile(H, npref)
        tk2 = _pick_tile(I, kpref)
        if estimate(row, tn1, tk1, tn2, tk2) <= vmem_cap:
            break
        if kpref > 256:
            kpref //= 2
        elif npref > 256:
            npref //= 2
        elif row > 128:
            row //= 2
        else:
            break   # best effort; vmem_limit will be raised to what is needed

    return {"row_pref": row, "tn1": tn1, "tk1": tk1,
            "tn2": tn2, "tk2": tk2, "vmem_cap": vmem_cap}


# ---------------------------------------------------------------------------
# kernels
# ---------------------------------------------------------------------------
def _gate_up_silu_kernel(x_ref, wgu_ref, o_ref, acc_ref):
    """o = up * silu(gate) for one (tm, tn) output tile, reducing over K.

    wgu_ref is the (tk, 2*tn) concatenated [gate_cols_j | up_cols_j] weight
    block, so a single MXU dot feeds one (tm, 2*tn) f32 accumulator."""
    k = pl.program_id(2)

    @pl.when(k == 0)
    def _():
        acc_ref[...] = jnp.zeros_like(acc_ref)

    acc_ref[...] += jnp.dot(x_ref[...], wgu_ref[...],
                            preferred_element_type=jnp.float32)

    @pl.when(k == pl.num_programs(2) - 1)
    def _():
        tn = o_ref.shape[-1]
        acc = acc_ref[...]
        g = acc[:, :tn]
        u = acc[:, tn:]
        # silu(g) = g * sigmoid(g); reciprocal goes to the EUP slot.
        sig = pl.reciprocal(1.0 + jnp.exp(-g), approx=True)
        o_ref[...] = (u * g * sig).astype(o_ref.dtype)


def _matmul_kernel(x_ref, w_ref, o_ref, acc_ref):
    """Standard tiled matmul with f32 accumulator (down_proj)."""
    k = pl.program_id(2)

    @pl.when(k == 0)
    def _():
        acc_ref[...] = jnp.zeros_like(acc_ref)

    acc_ref[...] += jnp.dot(x_ref[...], w_ref[...],
                            preferred_element_type=jnp.float32)

    @pl.when(k == pl.num_programs(2) - 1)
    def _():
        o_ref[...] = acc_ref[...].astype(o_ref.dtype)


# ---------------------------------------------------------------------------
# weight preparation (run ONCE at weight-load time)
# ---------------------------------------------------------------------------
def phi3_mlp_prepare_weights(gate_up_weight, down_weight):
    """One-time re-layout of the Phi3MLP weights.

    gate_up_weight: (2*I, H)  -- nn.Linear weight (output-major, no bias)
    down_weight:    (H, I)

    Returns (wgu, wd, plan):
      wgu : (H, 2*I) with gate^T / up^T columns interleaved per tn1-wide tile,
            so the j-th (tk1, 2*tn1) block is [gate_cols_j | up_cols_j].
      wd  : (I, H) down_proj weight transposed once.
    """
    two_I, H = gate_up_weight.shape
    assert two_I % 2 == 0, gate_up_weight.shape
    I = two_I // 2
    Hd, Id = down_weight.shape
    assert Hd == H and Id == I, (down_weight.shape, gate_up_weight.shape)

    plan = _make_plan(H, I)
    tn1 = plan["tn1"]
    nblk = I // tn1

    gate_t = jnp.transpose(gate_up_weight[:I, :])   # (H, I)
    up_t = jnp.transpose(gate_up_weight[I:, :])     # (H, I)
    wgu = jnp.concatenate(
        [gate_t.reshape(H, nblk, tn1), up_t.reshape(H, nblk, tn1)], axis=2
    ).reshape(H, 2 * I)
    wd = jnp.transpose(down_weight)                 # (I, H)
    return wgu, wd, plan


# ---------------------------------------------------------------------------
# forward (per-call path: only streams pre-laid-out weights)
# ---------------------------------------------------------------------------
def phi3_mlp_prepared(hidden_states, wgu, wd, plan):
    orig_shape = hidden_states.shape
    H = orig_shape[-1]
    two_I = wgu.shape[1]
    I = two_I // 2
    assert wgu.shape[0] == H and wd.shape == (I, H), (wgu.shape, wd.shape, H)

    in_dtype = hidden_states.dtype
    # keep the intermediate in the promoted dtype for bit-faithful semantics
    out_dtype = jnp.result_type(in_dtype, wgu.dtype)

    R = 1
    for d in orig_shape[:-1]:
        R *= d
    x2d = hidden_states.reshape(R, H)

    tn1, tk1 = plan["tn1"], plan["tk1"]
    tn2, tk2 = plan["tn2"], plan["tk2"]
    cap = plan["vmem_cap"]

    # Row tile: dtype-sublane aligned; ragged last tile handled by cdiv grid
    # (no jnp.pad of x / no output slice -> no extra HBM copies).
    tm = min(plan["row_pref"], _round_up(R, _sublane_multiple(in_dtype)))
    gm = pl.cdiv(R, tm)

    x_isz = jnp.dtype(in_dtype).itemsize
    w_isz = jnp.dtype(wgu.dtype).itemsize
    o_isz = jnp.dtype(out_dtype).itemsize

    def limit(needed):
        # needed blocks + 25% headroom for Mosaic internals, clamped to the
        # per-generation cap but never below what the blocks require.
        return int(max(min(needed + needed // 4 + (4 << 20), cap),
                       needed, 32 << 20))

    # ---- Stage 1: h = up * silu(gate) -------------------------------------
    need1 = (2 * (tm * tk1 * x_isz + tk1 * 2 * tn1 * w_isz + tm * tn1 * o_isz)
             + tm * 2 * tn1 * 4)
    h = pl.pallas_call(
        _gate_up_silu_kernel,
        out_shape=jax.ShapeDtypeStruct((R, I), out_dtype),
        grid_spec=pltpu.PrefetchScalarGridSpec(
            num_scalar_prefetch=0,
            grid=(gm, I // tn1, H // tk1),
            in_specs=[
                pl.BlockSpec((tm, tk1), lambda i, j, k: (i, k)),        # x
                pl.BlockSpec((tk1, 2 * tn1), lambda i, j, k: (k, j)),   # [gate|up]
            ],
            out_specs=pl.BlockSpec((tm, tn1), lambda i, j, k: (i, j)),
            scratch_shapes=[pltpu.VMEM((tm, 2 * tn1), jnp.float32)],
        ),
        compiler_params=pltpu.CompilerParams(
            dimension_semantics=("parallel", "parallel", "arbitrary"),
            vmem_limit_bytes=limit(need1),
        ),
    )(x2d, wgu)

    # ---- Stage 2: out = h @ W_down^T --------------------------------------
    need2 = (2 * (tm * tk2 * o_isz + tk2 * tn2 * w_isz + tm * tn2 * o_isz)
             + tm * tn2 * 4)
    out2d = pl.pallas_call(
        _matmul_kernel,
        out_shape=jax.ShapeDtypeStruct((R, H), out_dtype),
        grid_spec=pltpu.PrefetchScalarGridSpec(
            num_scalar_prefetch=0,
            grid=(gm, H // tn2, I // tk2),
            in_specs=[
                pl.BlockSpec((tm, tk2), lambda i, j, k: (i, k)),   # h tile
                pl.BlockSpec((tk2, tn2), lambda i, j, k: (k, j)),  # down weight
            ],
            out_specs=pl.BlockSpec((tm, tn2), lambda i, j, k: (i, j)),
            scratch_shapes=[pltpu.VMEM((tm, tn2), jnp.float32)],
        ),
        compiler_params=pltpu.CompilerParams(
            dimension_semantics=("parallel", "parallel", "arbitrary"),
            vmem_limit_bytes=limit(need2),
        ),
    )(h, wd)

    return out2d.reshape(orig_shape[:-1] + (H,))


def phi3_mlp(hidden_states, gate_up_weight, down_weight):
    """Convenience wrapper matching Phi3MLP.forward(hidden_states).

    In production, call phi3_mlp_prepare_weights() ONCE at weight-load time
    and reuse (wgu, wd, plan) across calls so the per-call path streams the
    weights exactly once (no per-call transpose traffic)."""
    wgu, wd, plan = phi3_mlp_prepare_weights(gate_up_weight, down_weight)
    return phi3_mlp_prepared(hidden_states, wgu, wd, plan)


# ---------------------------------------------------------------------------
# pure-JAX reference mirroring the PyTorch forward
# ---------------------------------------------------------------------------
def phi3_mlp_ref(hidden_states, gate_up_weight, down_weight):
    up_states = hidden_states @ gate_up_weight.T
    gate, up = jnp.split(up_states, 2, axis=-1)
    up = up * (gate * jax.nn.sigmoid(gate))        # SiLU activation
    return up @ down_weight.T


if __name__ == "__main__":
    key = jax.random.PRNGKey(0)
    k1, k2, k3 = jax.random.split(key, 3)

    batch, seq, hidden, intermediate = 2, 8, 32, 64

    x = jax.random.normal(k1, (batch, seq, hidden), dtype=jnp.float32)
    gate_up_w = jax.random.normal(
        k2, (2 * intermediate, hidden), dtype=jnp.float32) * 0.05
    down_w = jax.random.normal(
        k3, (hidden, intermediate), dtype=jnp.float32) * 0.05

    # Weight re-layout hoisted out of the forward (done once, "load time").
    wgu, wd, plan = phi3_mlp_prepare_weights(gate_up_w, down_w)

    fwd = jax.jit(lambda h, a, b: phi3_mlp_prepared(h, a, b, plan))
    out = jax.block_until_ready(fwd(x, wgu, wd))

    ref = phi3_mlp_ref(x, gate_up_w, down_w)
    assert out.shape == ref.shape, (out.shape, ref.shape)
    assert out.dtype == ref.dtype, (out.dtype, ref.dtype)
    max_err = float(jnp.max(jnp.abs(out - ref)))
    assert jnp.allclose(out, ref, atol=1e-3, rtol=1e-3), f"mismatch: {max_err}"

    print("KERNEL_OK")
</pallas_src>

<mosaic_0001>
module attributes {stable_mosaic.version = 11 : i64} {
  func.func @_matmul_kernel(%arg0: i32, %arg1: i32, %arg2: i32, %arg3: memref<16x64xf32, #tpu.memory_space<vmem>>, %arg4: memref<64x32xf32, #tpu.memory_space<vmem>>, %arg5: memref<16x32xf32, #tpu.memory_space<vmem>>, %arg6: memref<16x32xf32, #tpu.memory_space<vmem>>) attributes {dimension_semantics = [#tpu.dimension_semantics<parallel>, #tpu.dimension_semantics<parallel>, #tpu.dimension_semantics<arbitrary>], iteration_bounds = array<i64: 1, 1, 1>, scalar_prefetch = 0 : i64, scratch_operands = 1 : i64, tpu.core_type = #tpu.core_type<tc>, window_params = [{transform_indices = @transform_0, window_bounds = array<i64: 16, 64>}, {transform_indices = @transform_1, window_bounds = array<i64: 64, 32>}, {transform_indices = @transform_2, window_bounds = array<i64: 16, 32>}]} {
    %c0_i32 = arith.constant 0 : i32
    %0 = arith.cmpi eq, %arg2, %c0_i32 : i32
    %1 = arith.extui %0 : i1 to i32
    %c0_i32_0 = arith.constant 0 : i32
    %2 = arith.cmpi ne, %1, %c0_i32_0 : i32
    scf.if %2 {
      %cst_10 = arith.constant 0.000000e+00 : f32
      %12 = vector.broadcast %cst_10 : f32 to vector<16x32xf32>
      %c0_11 = arith.constant 0 : index
      %c0_12 = arith.constant 0 : index
      %13 = vector.load %arg6[%c0_11, %c0_12] : memref<16x32xf32, #tpu.memory_space<vmem>>, vector<16x32xf32>
      tpu.vector_store %arg6[%c0_11, %c0_12], %12 {strides = array<i32>} : memref<16x32xf32, #tpu.memory_space<vmem>>, vector<16x32xf32>,
    } else {
    }
    %c0 = arith.constant 0 : index
    %c0_1 = arith.constant 0 : index
    %3 = vector.load %arg6[%c0, %c0_1] : memref<16x32xf32, #tpu.memory_space<vmem>>, vector<16x32xf32>
    %c0_2 = arith.constant 0 : index
    %c0_3 = arith.constant 0 : index
    %4 = vector.load %arg3[%c0_2, %c0_3] : memref<16x64xf32, #tpu.memory_space<vmem>>, vector<16x64xf32>
    %c0_4 = arith.constant 0 : index
    %c0_5 = arith.constant 0 : index
    %5 = vector.load %arg4[%c0_4, %c0_5] : memref<64x32xf32, #tpu.memory_space<vmem>>, vector<64x32xf32>
    %cst = arith.constant dense<0.000000e+00> : vector<16x32xf32>
    %6 = tpu.matmul %4, %5, %cst {dimension_numbers = #tpu.dot_dimension_numbers<[1], [0], [0], [1], [0, 0, 1, 1], [], []>} : vector<16x64xf32>, vector<64x32xf32>, vector<16x32xf32> -> vector<16x32xf32>
    %7 = arith.addf %3, %6 : vector<16x32xf32>
    %c0_6 = arith.constant 0 : index
    %c0_7 = arith.constant 0 : index
    %8 = vector.load %arg6[%c0_6, %c0_7] : memref<16x32xf32, #tpu.memory_space<vmem>>, vector<16x32xf32>
    tpu.vector_store %arg6[%c0_6, %c0_7], %7 {strides = array<i32>} : memref<16x32xf32, #tpu.memory_space<vmem>>, vector<16x32xf32>,
    %c0_i32_8 = arith.constant 0 : i32
    %9 = arith.cmpi eq, %arg2, %c0_i32_8 : i32
    %10 = arith.extui %9 : i1 to i32
    %c0_i32_9 = arith.constant 0 : i32
    %11 = arith.cmpi ne, %10, %c0_i32_9 : i32
    scf.if %11 {
      %c0_10 = arith.constant 0 : index
      %c0_11 = arith.constant 0 : index
      %12 = vector.load %arg6[%c0_10, %c0_11] : memref<16x32xf32, #tpu.memory_space<vmem>>, vector<16x32xf32>
      %c0_12 = arith.constant 0 : index
      %c0_13 = arith.constant 0 : index
      %13 = vector.load %arg5[%c0_12, %c0_13] : memref<16x32xf32, #tpu.memory_space<vmem>>, vector<16x32xf32>
      tpu.vector_store %arg5[%c0_12, %c0_13], %12 {strides = array<i32>} : memref<16x32xf32, #tpu.memory_space<vmem>>, vector<16x32xf32>,
    } else {
    }
    return
  }
  func.func @transform_0(%arg0: i32, %arg1: i32, %arg2: i32) -> (i32, i32) {
    %c0_i32 = arith.constant 0 : i32
    return %arg0, %arg2 : i32, i32
  }
  func.func @transform_1(%arg0: i32, %arg1: i32, %arg2: i32) -> (i32, i32) {
    %c0_i32 = arith.constant 0 : i32
    return %arg2, %arg1 : i32, i32
  }
  func.func @transform_2(%arg0: i32, %arg1: i32, %arg2: i32) -> (i32, i32) {
    %c0_i32 = arith.constant 0 : i32
    return %arg0, %arg1 : i32, i32
  }
}

module attributes {stable_mosaic.version = 11 : i64} {
  func.func @_gate_up_silu_kernel(%arg0: i32, %arg1: i32, %arg2: i32, %arg3: memref<16x32xf32, #tpu.memory_space<vmem>>, %arg4: memref<32x128xf32, #tpu.memory_space<vmem>>, %arg5: memref<16x64xf32, #tpu.memory_space<vmem>>, %arg6: memref<16x128xf32, #tpu.memory_space<vmem>>) attributes {dimension_semantics = [#tpu.dimension_semantics<parallel>, #tpu.dimension_semantics<parallel>, #tpu.dimension_semantics<arbitrary>], iteration_bounds = array<i64: 1, 1, 1>, scalar_prefetch = 0 : i64, scratch_operands = 1 : i64, tpu.core_type = #tpu.core_type<tc>, window_params = [{transform_indices = @transform_0, window_bounds = array<i64: 16, 32>}, {transform_indices = @transform_1, window_bounds = array<i64: 32, 128>}, {transform_indices = @transform_2, window_bounds = array<i64: 16, 64>}]} {
    %c0_i32 = arith.constant 0 : i32
    %0 = arith.cmpi eq, %arg2, %c0_i32 : i32
    %1 = arith.extui %0 : i1 to i32
    %c0_i32_0 = arith.constant 0 : i32
    %2 = arith.cmpi ne, %1, %c0_i32_0 : i32
    scf.if %2 {
      %cst_10 = arith.constant 0.000000e+00 : f32
      %12 = vector.broadcast %cst_10 : f32 to vector<16x128xf32>
      %c0_11 = arith.constant 0 : index
      %c0_12 = arith.constant 0 : index
      %13 = vector.load %arg6[%c0_11, %c0_12] : memref<16x128xf32, #tpu.memory_space<vmem>>, vector<16x128xf32>
      tpu.vector_store %arg6[%c0_11, %c0_12], %12 {strides = array<i32>} : memref<16x128xf32, #tpu.memory_space<vmem>>, vector<16x128xf32>,
    } else {
    }
    %c0 = arith.constant 0 : index
    %c0_1 = arith.constant 0 : index
    %3 = vector.load %arg6[%c0, %c0_1] : memref<16x128xf32, #tpu.memory_space<vmem>>, vector<16x128xf32>
    %c0_2 = arith.constant 0 : index
    %c0_3 = arith.constant 0 : index
    %4 = vector.load %arg3[%c0_2, %c0_3] : memref<16x32xf32, #tpu.memory_space<vmem>>, vector<16x32xf32>
    %c0_4 = arith.constant 0 : index
    %c0_5 = arith.constant 0 : index
    %5 = vector.load %arg4[%c0_4, %c0_5] : memref<32x128xf32, #tpu.memory_space<vmem>>, vector<32x128xf32>
    %cst = arith.constant dense<0.000000e+00> : vector<16x128xf32>
    %6 = tpu.matmul %4, %5, %cst {dimension_numbers = #tpu.dot_dimension_numbers<[1], [0], [0], [1], [0, 0, 1, 1], [], []>} : vector<16x32xf32>, vector<32x128xf32>, vector<16x128xf32> -> vector<16x128xf32>
    %7 = arith.addf %3, %6 : vector<16x128xf32>
    %c0_6 = arith.constant 0 : index
    %c0_7 = arith.constant 0 : index
    %8 = vector.load %arg6[%c0_6, %c0_7] : memref<16x128xf32, #tpu.memory_space<vmem>>, vector<16x128xf32>
    tpu.vector_store %arg6[%c0_6, %c0_7], %7 {strides = array<i32>} : memref<16x128xf32, #tpu.memory_space<vmem>>, vector<16x128xf32>,
    %c0_i32_8 = arith.constant 0 : i32
    %9 = arith.cmpi eq, %arg2, %c0_i32_8 : i32
    %10 = arith.extui %9 : i1 to i32
    %c0_i32_9 = arith.constant 0 : i32
    %11 = arith.cmpi ne, %10, %c0_i32_9 : i32
    scf.if %11 {
      %c0_10 = arith.constant 0 : index
      %c0_11 = arith.constant 0 : index
      %12 = vector.load %arg6[%c0_10, %c0_11] : memref<16x128xf32, #tpu.memory_space<vmem>>, vector<16x128xf32>
      %13 = vector.extract_strided_slice %12 {offsets = [0, 0], sizes = [16, 64], strides = [1, 1]} : vector<16x128xf32> to vector<16x64xf32>
      %14 = vector.extract_strided_slice %12 {offsets = [0, 64], sizes = [16, 64], strides = [1, 1]} : vector<16x128xf32> to vector<16x64xf32>
      %cst_12 = arith.constant 0.000000e+00 : f32
      %15 = vector.broadcast %cst_12 : f32 to vector<16x64xf32>
      %16 = arith.subf %15, %13 : vector<16x64xf32>
      %17 = math.exp %16 : vector<16x64xf32>
      %cst_13 = arith.constant 1.000000e+00 : f32
      %18 = vector.broadcast %cst_13 : f32 to vector<16x64xf32>
      %19 = arith.addf %18, %17 : vector<16x64xf32>
      %20 = tpu.reciprocal %19 {approx = true} : vector<16x64xf32> -> vector<16x64xf32>
      %21 = arith.mulf %14, %13 : vector<16x64xf32>
      %22 = arith.mulf %21, %20 : vector<16x64xf32>
      %c0_14 = arith.constant 0 : index
      %c0_15 = arith.constant 0 : index
      %23 = vector.load %arg5[%c0_14, %c0_15] : memref<16x64xf32, #tpu.memory_space<vmem>>, vector<16x64xf32>
      tpu.vector_store %arg5[%c0_14, %c0_15], %22 {strides = array<i32>} : memref<16x64xf32, #tpu.memory_space<vmem>>, vector<16x64xf32>,
    } else {
    }
    return
  }
  func.func @transform_0(%arg0: i32, %arg1: i32, %arg2: i32) -> (i32, i32) {
    %c0_i32 = arith.constant 0 : i32
    return %arg0, %arg2 : i32, i32
  }
  func.func @transform_1(%arg0: i32, %arg1: i32, %arg2: i32) -> (i32, i32) {
    %c0_i32 = arith.constant 0 : i32
    return %arg2, %arg1 : i32, i32
  }
  func.func @transform_2(%arg0: i32, %arg1: i32, %arg2: i32) -> (i32, i32) {
    %c0_i32 = arith.constant 0 : i32
    return %arg0, %arg1 : i32, i32
  }
}

</mosaic_0001>

<llo_original>
// kernel: _lambda_.3
$region0: #{_lambda_.3}
  #allocation0 [shape = 'u32[]', space=smem, size = 0x4, offset = 0x4, fixed_abs, tag = 'smem constant byte address 0x4 - core index']
  #allocation1 [shape = 'u32[144,128]{1,0:T(1,128)}', space=vmem, size = 0x12000, scoped, tag = 'internal scratch']
  #allocation2 [shape = 'f32[16,32]{1,0:T(8,128)}', space=vmem, size = 0x2000, scoped, tag = 'scratch operand']
  %s0 = inlined_call_operand.vmem [shape: f32[16,64], index: 0, kind: input, shape index: {}]
  %s1 = inlined_call_operand.vmem [shape: f32[64,32], index: 1, kind: input, shape index: {}]
  %s2 = inlined_call_operand.hbm [shape: f32[16,32], index: 2, kind: output, shape index: {}]
  %s3 = sld [smem:[#allocation0]]
  $region26: #{_lambda_.3} parent=0
    _
  %s5 = ssub.s32 1, %s3
  %s6 = scalar_select 0, %s5, %s3
  $region1: #{_lambda_.3} parent=0
    #allocation3 [shape = 'u8[8192]{0}', space=vmem, size = 0x2000, scoped, tag = 'output window, operand 0, single buffered']
    #allocation4 [shape = 's32[1]{0}', space=sflag, size = 0x4, scoped, tag = 'scoped memory for _lambda_.3']
    %7 = vsyncpa [#allocation4], 0
    // Predicated region
    $region2: #{_lambda_.3} parent=1 // pred_check
      _
    $region3: #{_lambda_.3} parent=1 // pred_check_branch
      %9 = sbr.rel (0) target = $region5
    $region4: #{_lambda_.3} parent=1 // pred_region
      _
    $region5: #{_lambda_.3} parent=1 // pred_fallthru
      _
    // Predicated region
    $region6: #{_lambda_.3} parent=1 // pred_check
      _
    $region7: #{_lambda_.3} parent=1 // pred_check_branch
      %11 = sbr.rel (0) target = $region9
    $region8: #{_lambda_.3} parent=1 // pred_region
      _
    $region9: #{_lambda_.3} parent=1 // pred_fallthru
      _
    %p12 = scmp.eq.s32.totalorder 0, 0
    // Predicated region
    $region10: #{_lambda_.3} parent=1 // pred_check
      %p13 = pneg %p12
    $region11: #{_lambda_.3} parent=1 // pred_check_branch
      %15 = sbr.rel (%p13) target = $region13
    $region12: #{_lambda_.3} parent=1 // pred_region
      %vm16 = vcmask 261120
      %17 = vst.msk [vmem:[#allocation2] sm:$0xff] %vm16, 0.0
      %18 = vst.msk [vmem:[#allocation2 + $0x8] sm:$0xff] %vm16, 0.0
    $region13: #{_lambda_.3} parent=1 // pred_fallthru
      _
    %v19 = vld [vmem:[#allocation2] sm:$0xff]
    %v20 = vld [vmem:[#allocation2 + $0x8] sm:$0xff]
    %v21 = vld [vmem:[%s0] sm:$0xff]
    %v22 = vld [vmem:[%s0 + $0x8] sm:$0xff]
    %v23 = vld [vmem:[%s1] sm:$0xff]
    %v24 = vld [vmem:[%s1 + $0x8] sm:$0xff]
    %v25 = vld [vmem:[%s1 + $0x10] sm:$0xff]
    %v26 = vld [vmem:[%s1 + $0x18] sm:$0xff]
    %v27 = vld [vmem:[%s1 + $0x20] sm:$0xff]
    %v28 = vld [vmem:[%s1 + $0x28] sm:$0xff]
    %v29 = vld [vmem:[%s1 + $0x30] sm:$0xff]
    %v30 = vld [vmem:[%s1 + $0x38] sm:$0xff]
    %vm31 = vcmask 523264
    %v33 = vsel %vm31, %v21, 0
    %v36 = vsel %vm31, %v22, 0
    %38 = vmatprep.subr.mxu0 0.0
    %39 = vmatpush1.msra.mxu0 %v23
    %40 = vmatprep.subr.mxu0 0.0
    %41 = vmatpush1.msra.mxu0 %v24
    %42 = vmatprep.subr.mxu0 0.0
    %43 = vmatpush1.msra.mxu0 %v25
    %44 = vmatprep.subr.mxu0 0.0
    %45 = vmatpush1.msra.mxu0 %v26
    %46 = vmatprep.subr.mxu0 0.0
    %47 = vmatpush1.msra.mxu0 %v27
    %48 = vmatprep.subr.mxu0 0.0
    %49 = vmatpush1.msra.mxu0 %v28
    %50 = vmatprep.subr.mxu0 0.0
    %51 = vmatpush1.msra.mxu0 %v29
    %52 = vmatprep.subr.mxu0 0.0
    %53 = vmatpush1.msra.mxu0 %v30
    %54 = vmatprep.subr.mxu0 0.0
    %55 = vmatpush1.msra.mxu0 0.0
    %56 = vmatprep.subr.mxu0 0.0
    %57 = vmatpush1.msra.mxu0 0.0
    %58 = vmatprep.subr.mxu0 0.0
    %59 = vmatpush1.msra.mxu0 0.0
    %60 = vmatprep.subr.mxu0 0.0
    %61 = vmatpush1.msra.mxu0 0.0
    %62 = vmatprep.subr.mxu0 0.0
    %63 = vmatpush1.msra.mxu0 0.0
    %64 = vmatprep.subr.mxu0 0.0
    %65 = vmatpush1.msra.mxu0 0.0
    %66 = vmatprep.subr.mxu0 0.0
    %67 = vmatpush1.msra.mxu0 0.0
    %68 = vmatprep.subr.mxu0 0.0
    %69 = vmatpush1.msra.mxu0 0.0
    %70 = vmatprep.subr.mxu0 0.0
    %71 = vmatpush1.msra.mxu0 0.0
    %72 = vmatprep.subr.mxu0 0.0
    %73 = vmatpush1.msra.mxu0 0.0
    %74 = vmatprep.subr.mxu0 0.0
    %75 = vmatpush1.msra.mxu0 0.0
    %76 = vmatprep.subr.mxu0 0.0
    %77 = vmatpush1.msra.mxu0 0.0
    %78 = vmatprep.subr.mxu0 0.0
    %79 = vmatpush1.msra.mxu0 0.0
    %80 = vmatprep.subr.mxu0 0.0
    %81 = vmatpush1.msra.mxu0 0.0
    %82 = vmatprep.subr.mxu0 0.0
    %83 = vmatpush1.msra.mxu0 0.0
    %84 = vmatprep.subr.mxu0 0.0
    %85 = vmatpush1.msra.mxu0 0.0
    %86 = vmatprep.subr.mxu0 0.0
    %87 = vmatpush1.msra.mxu0 0.0
    %88 = vmatprep.subr.mxu0 0.0
    %89 = vmatpush1.msra.mxu0 0.0
    %90 = vmatprep.subr.mxu0 0.0
    %91 = vmatpush1.msra.mxu0 0.0
    %92 = vmatprep.subr.mxu0 0.0
    %93 = vmatpush1.msra.mxu0 0.0
    %94 = vmatprep.subr.mxu0 0.0
    %95 = vmatpush1.msra.mxu0 0.0
    %96 = vmatprep.subr.mxu0 0.0
    %97 = vmatpush1.msra.mxu0 0.0
    %98 = vmatprep.subr.mxu0 0.0
    %99 = vmatpush1.msra.mxu0 0.0
    %100 = vmatprep.subr.mxu0 0.0
    %101 = vmatpush1.msra.mxu0 0.0
    %102 = vmatprep.mubr.f32.mxu0 0.0
    %103 = vmatmul.mubr.f32.gmra.mrb[0].mxu0 %v33
    %v104 = vpop.f32.mrb[0].mxu0
    %v105 = vadd.f32 0.0, %v104
    %v106 = vpop.f32.mrb[0].mxu0
    %107 = vmatprep.mubr.f32.mxu0 0.0
    %108 = vmatmul.mubr.f32.gmra.mrb[0].mxu0 %v36
    %v109 = vpop.f32.mrb[0].mxu0
    %v110 = vadd.f32 0.0, %v109
    %v111 = vpop.f32.mrb[0].mxu0
    %112 = vdwg.mxu0
    %v113 = vadd.f32 %v19, %v105
    %v114 = vadd.f32 %v20, %v110
    %vm115 = vcmask 261120
    %116 = vst.msk [vmem:[#allocation2] sm:$0xff] %vm115, %v113
    %117 = vst.msk [vmem:[#allocation2 + $0x8] sm:$0xff] %vm115, %v114
    // Predicated region
    $region14: #{_lambda_.3} parent=1 // pred_check
      %p118 = pneg %p12
    $region15: #{_lambda_.3} parent=1 // pred_check_branch
      %120 = sbr.rel (%p118) target = $region17
    $region16: #{_lambda_.3} parent=1 // pred_region
      %v121 = vld [vmem:[#allocation2] sm:$0xff]
      %v122 = vld [vmem:[#allocation2 + $0x8] sm:$0xff]
      %123 = vst.msk [vmem:[#allocation3] sm:$0xff] %vm115, %v121
      %124 = vst.msk [vmem:[#allocation3 + $0x8] sm:$0xff] %vm115, %v122
    $region17: #{_lambda_.3} parent=1 // pred_fallthru
      _
    // Predicated region
    $region18: #{_lambda_.3} parent=1 // pred_check
      _
    $region19: #{_lambda_.3} parent=1 // pred_check_branch
      %126 = sbr.rel (0) target = $region21
    $region20: #{_lambda_.3} parent=1 // pred_region
      %s128 = ssub.s32 256, 256
      %129 = vsyncadd [#allocation4], %s128
      %s130 = sshll.u32 [#allocation3], 4
      %s131 = int_to_ptr.vmem [resolvable:$true] %s130
      %136 = dma.vmem_to_hbm [thread:$0]  %s131, 256, %s2, [#allocation4], 128, 128, 8
    $region21: #{_lambda_.3} parent=1 // pred_fallthru
      _
    // Predicated region
    $region22: #{_lambda_.3} parent=1 // pred_check
      _
    $region23: #{_lambda_.3} parent=1 // pred_check_branch
      %138 = sbr.rel (0) target = $region25
    $region24: #{_lambda_.3} parent=1 // pred_region
      %139 = dma.done [#allocation4], 256
    $region25: #{_lambda_.3} parent=1 // pred_fallthru
      _
    %140 = vsyncpa [#allocation4], 1

// kernel: _lambda_.2
$region0: #{_lambda_.2}
  #allocation0 [shape = 'u32[]', space=smem, size = 0x4, offset = 0x4, fixed_abs, tag = 'smem constant byte address 0x4 - core index']
  #allocation1 [shape = 'u32[144,128]{1,0:T(1,128)}', space=vmem, size = 0x12000, scoped, tag = 'internal scratch']
  #allocation2 [shape = 'f32[16,128]{1,0:T(8,128)}', space=vmem, size = 0x2000, scoped, tag = 'scratch operand']
  %s0 = inlined_call_operand.hbm [shape: f32[16,32], index: 0, kind: input, shape index: {}]
  %s1 = inlined_call_operand.hbm [shape: f32[32,128], index: 1, kind: input, shape index: {}]
  %s2 = inlined_call_operand.vmem [shape: f32[16,64], index: 2, kind: output, shape index: {}]
  %s3 = sld [smem:[#allocation0]]
  $region34: #{_lambda_.2} parent=0
    _
  %s5 = ssub.s32 1, %s3
  %s6 = scalar_select 0, %s5, %s3
  $region1: #{_lambda_.2} parent=0
    #allocation3 [shape = 'u8[8192]{0}', space=vmem, size = 0x2000, scoped, tag = 'input window, operand 0, single buffered']
    #allocation4 [shape = 's32[1]{0}', space=sflag, size = 0x4, scoped, tag = 'scoped memory for _lambda_.2']
    #allocation5 [shape = 'u8[16384]{0}', space=vmem, size = 0x4000, scoped, tag = 'input window, operand 1, single buffered']
    #allocation6 [shape = 's32[1]{0}', space=sflag, size = 0x4, scoped, tag = 'scoped memory for _lambda_.2']
    %7 = vsyncpa [#allocation4], 0
    %8 = vsyncpa [#allocation6], 0
    // Predicated region
    $region2: #{_lambda_.2} parent=1 // pred_check
      _
    $region3: #{_lambda_.2} parent=1 // pred_check_branch
      %10 = sbr.rel (0) target = $region5
    $region4: #{_lambda_.2} parent=1 // pred_region
      %s12 = ssub.s32 256, 256
      %13 = vsyncadd [#allocation4], %s12
      %s14 = sshll.u32 [#allocation3], 4
      %s15 = int_to_ptr.vmem [resolvable:$true] %s14
      %20 = dma.hbm_to_vmem [thread:$0]  %s0, 256, %s15, [#allocation4], 128, 128, 8
    $region5: #{_lambda_.2} parent=1 // pred_fallthru
      _
    // Predicated region
    $region6: #{_lambda_.2} parent=1 // pred_check
      _
    $region7: #{_lambda_.2} parent=1 // pred_check_branch
      %22 = sbr.rel (0) target = $region9
    $region8: #{_lambda_.2} parent=1 // pred_region
      %s24 = ssub.s32 512, 512
      %25 = vsyncadd [#allocation6], %s24
      %s26 = sshll.u32 [#allocation5], 4
      %s27 = int_to_ptr.vmem [resolvable:$true] %s26
      %32 = dma.hbm_to_vmem [thread:$0]  %s1, 512, %s27, [#allocation6], 128, 128, 8
    $region9: #{_lambda_.2} parent=1 // pred_fallthru
      _
    // Predicated region
    $region10: #{_lambda_.2} parent=1 // pred_check
      _
    $region11: #{_lambda_.2} parent=1 // pred_check_branch
      %34 = sbr.rel (0) target = $region13
    $region12: #{_lambda_.2} parent=1 // pred_region
      %35 = dma.done [#allocation4], 256
    $region13: #{_lambda_.2} parent=1 // pred_fallthru
      _
    // Predicated region
    $region14: #{_lambda_.2} parent=1 // pred_check
      _
    $region15: #{_lambda_.2} parent=1 // pred_check_branch
      %37 = sbr.rel (0) target = $region17
    $region16: #{_lambda_.2} parent=1 // pred_region
      %38 = dma.done [#allocation6], 512
    $region17: #{_lambda_.2} parent=1 // pred_fallthru
      _
    %p39 = scmp.eq.s32.totalorder 0, 0
    // Predicated region
    $region18: #{_lambda_.2} parent=1 // pred_check
      %p40 = pneg %p39
    $region19: #{_lambda_.2} parent=1 // pred_check_branch
      %42 = sbr.rel (%p40) target = $region21
    $region20: #{_lambda_.2} parent=1 // pred_region
      %43 = vst [vmem:[#allocation2] sm:$0xff] 0.0
      %44 = vst [vmem:[#allocation2 + $0x8] sm:$0xff] 0.0
    $region21: #{_lambda_.2} parent=1 // pred_fallthru
      _
    %v45 = vld [vmem:[#allocation2] sm:$0xff]
    %v46 = vld [vmem:[#allocation2 + $0x8] sm:$0xff]
    %v47 = vld [vmem:[#allocation3] sm:$0xff]
    %v48 = vld [vmem:[#allocation3 + $0x8] sm:$0xff]
    %v49 = vld [vmem:[#allocation5] sm:$0xff]
    %v50 = vld [vmem:[#allocation5 + $0x8] sm:$0xff]
    %v51 = vld [vmem:[#allocation5 + $0x10] sm:$0xff]
    %v52 = vld [vmem:[#allocation5 + $0x18] sm:$0xff]
    %vm53 = vcmask 261120
    %v55 = vsel %vm53, %v47, 0
    %v58 = vsel %vm53, %v48, 0
    %60 = vmatprep.subr.mxu0 0.0
    %61 = vmatpush1.msra.mxu0 %v49
    %62 = vmatprep.subr.mxu0 0.0
    %63 = vmatpush1.msra.mxu0 %v50
    %64 = vmatprep.subr.mxu0 0.0
    %65 = vmatpush1.msra.mxu0 %v51
    %66 = vmatprep.subr.mxu0 0.0
    %67 = vmatpush1.msra.mxu0 %v52
    %68 = vmatprep.subr.mxu0 0.0
    %69 = vmatpush1.msra.mxu0 0.0
    %70 = vmatprep.subr.mxu0 0.0
    %71 = vmatpush1.msra.mxu0 0.0
    %72 = vmatprep.subr.mxu0 0.0
    %73 = vmatpush1.msra.mxu0 0.0
    %74 = vmatprep.subr.mxu0 0.0
    %75 = vmatpush1.msra.mxu0 0.0
    %76 = vmatprep.subr.mxu0 0.0
    %77 = vmatpush1.msra.mxu0 0.0
    %78 = vmatprep.subr.mxu0 0.0
    %79 = vmatpush1.msra.mxu0 0.0
    %80 = vmatprep.subr.mxu0 0.0
    %81 = vmatpush1.msra.mxu0 0.0
    %82 = vmatprep.subr.mxu0 0.0
    %83 = vmatpush1.msra.mxu0 0.0
    %84 = vmatprep.subr.mxu0 0.0
    %85 = vmatpush1.msra.mxu0 0.0
    %86 = vmatprep.subr.mxu0 0.0
    %87 = vmatpush1.msra.mxu0 0.0
    %88 = vmatprep.subr.mxu0 0.0
    %89 = vmatpush1.msra.mxu0 0.0
    %90 = vmatprep.subr.mxu0 0.0
    %91 = vmatpush1.msra.mxu0 0.0
    %92 = vmatprep.subr.mxu0 0.0
    %93 = vmatpush1.msra.mxu0 0.0
    %94 = vmatprep.subr.mxu0 0.0
    %95 = vmatpush1.msra.mxu0 0.0
    %96 = vmatprep.subr.mxu0 0.0
    %97 = vmatpush1.msra.mxu0 0.0
    %98 = vmatprep.subr.mxu0 0.0
    %99 = vmatpush1.msra.mxu0 0.0
    %100 = vmatprep.subr.mxu0 0.0
    %101 = vmatpush1.msra.mxu0 0.0
    %102 = vmatprep.subr.mxu0 0.0
    %103 = vmatpush1.msra.mxu0 0.0
    %104 = vmatprep.subr.mxu0 0.0
    %105 = vmatpush1.msra.mxu0 0.0
    %106 = vmatprep.subr.mxu0 0.0
    %107 = vmatpush1.msra.mxu0 0.0
    %108 = vmatprep.subr.mxu0 0.0
    %109 = vmatpush1.msra.mxu0 0.0
    %110 = vmatprep.subr.mxu0 0.0
    %111 = vmatpush1.msra.mxu0 0.0
    %112 = vmatprep.subr.mxu0 0.0
    %113 = vmatpush1.msra.mxu0 0.0
    %114 = vmatprep.subr.mxu0 0.0
    %115 = vmatpush1.msra.mxu0 0.0
    %116 = vmatprep.subr.mxu0 0.0
    %117 = vmatpush1.msra.mxu0 0.0
    %118 = vmatprep.subr.mxu0 0.0
    %119 = vmatpush1.msra.mxu0 0.0
    %120 = vmatprep.subr.mxu0 0.0
    %121 = vmatpush1.msra.mxu0 0.0
    %122 = vmatprep.subr.mxu0 0.0
    %123 = vmatpush1.msra.mxu0 0.0
    %124 = vmatprep.mubr.f32.mxu0 0.0
    %125 = vmatmul.mubr.f32.gmra.mrb[0].mxu0 %v55
    %v126 = vpop.f32.mrb[0].mxu0
    %v127 = vadd.f32 0.0, %v126
    %v128 = vpop.f32.mrb[0].mxu0
    %129 = vmatprep.mubr.f32.mxu0 0.0
    %130 = vmatmul.mubr.f32.gmra.mrb[0].mxu0 %v58
    %v131 = vpop.f32.mrb[0].mxu0
    %v132 = vadd.f32 0.0, %v131
    %v133 = vpop.f32.mrb[0].mxu0
    %134 = vdwg.mxu0
    %v135 = vadd.f32 %v45, %v127
    %v136 = vadd.f32 %v46, %v132
    %137 = vst [vmem:[#allocation2] sm:$0xff] %v135
    %138 = vst [vmem:[#allocation2 + $0x8] sm:$0xff] %v136
    // Predicated region
    $region22: #{_lambda_.2} parent=1 // pred_check
      %p139 = pneg %p39
    $region23: #{_lambda_.2} parent=1 // pred_check_branch
      %141 = sbr.rel (%p139) target = $region25
    $region24: #{_lambda_.2} parent=1 // pred_region
      %v142 = vld [vmem:[#allocation2] sm:$0xff]
      %v143 = vld [vmem:[#allocation2 + $0x8] sm:$0xff]
      %v144 = vsub.f32 0.0, %v142
      %v145 = vsub.f32 0.0, %v143
      %v146 = vmul.f32 %v144, 1.442695
      %v147 = vpow.pop %v146
      %v148 = vmul.f32 %v145, 1.442695
      %v149 = vpow.pop %v148
      %v150 = vadd.f32 %v147, 1.0
      %v151 = vadd.f32 %v149, 1.0
      %v152 = vrcp.pop %v150
      %v153 = vrcp.pop %v151
      %156 = vrot.lane.b32.xlu0 %v142, 64
      %v157 = vpop.permute.xlu0 %156
      %158 = vrot.lane.b32.xlu0 %v143, 64
      %v159 = vpop.permute.xlu0 %158
      %v162 = vmul.f32 %v142, %v157
      %v163 = vmul.f32 %v143, %v159
      %166 = vrot.lane.b32.xlu0 %v152, 64
      %v167 = vpop.permute.xlu0 %166
      %168 = vrot.lane.b32.xlu0 %v153, 64
      %v169 = vpop.permute.xlu0 %168
      %v172 = vmul.f32 %v162, %v167
      %v173 = vmul.f32 %v163, %v169
      %176 = vrot.lane.b32.xlu0 %v172, 64
      %v177 = vpop.permute.xlu0 %176
      %178 = vrot.lane.b32.xlu0 %v173, 64
      %v179 = vpop.permute.xlu0 %178
      %vm182 = vcmask 523264
      %183 = vst.msk [vmem:[%s2] sm:$0xff] %vm182, %v177
      %184 = vst.msk [vmem:[%s2 + $0x8] sm:$0xff] %vm182, %v179
    $region25: #{_lambda_.2} parent=1 // pred_fallthru
      _
    // Predicated region
    $region26: #{_lambda_.2} parent=1 // pred_check
      _
    $region27: #{_lambda_.2} parent=1 // pred_check_branch
      %186 = sbr.rel (0) target = $region29
    $region28: #{_lambda_.2} parent=1 // pred_region
      _
    $region29: #{_lambda_.2} parent=1 // pred_fallthru
      _
    // Predicated region
    $region30: #{_lambda_.2} parent=1 // pred_check
      _
    $region31: #{_lambda_.2} parent=1 // pred_check_branch
      %188 = sbr.rel (0) target = $region33
    $region32: #{_lambda_.2} parent=1 // pred_region
      _
    $region33: #{_lambda_.2} parent=1 // pred_fallthru
      _
    %189 = vsyncpa [#allocation4], 1
    %190 = vsyncpa [#allocation6], 1

</llo_original>
